<compile_context>
chip_gen: v6e
topology: v6e:2x2x1
jax: 0.10.0
libtpu: 0.0.40
codegen_flags: <defaults>
</compile_context>

<pallas_src>
import functools

import jax
import jax.numpy as jnp
from jax.experimental import pallas as pl
from jax.experimental.pallas import tpu as pltpu


def _round_up(x, m):
    return ((x + m - 1) // m) * m


def _apply_activation(y, activate, slope):
    if activate == "leaky_relu":
        return jnp.where(y >= 0, y, slope * y)
    if activate == "relu":
        return jnp.maximum(y, 0.0)
    if activate == "sigmoid":
        return jax.nn.sigmoid(y)
    if activate == "tanh":
        return jnp.tanh(y)
    if activate == "gelu":
        return jax.nn.gelu(y)
    raise NotImplementedError(activate)


# ----------------------------------------------------------------------------
# Fused kernel: all Linear layers (+ activations) for one row tile
# ----------------------------------------------------------------------------
def _fused_mlp_kernel(*refs, n_layers, activate, slope, activate_last):
    # refs = (x_ref, w0, b0, w1, b1, ..., w_{L-1}, b_{L-1}, o_ref)
    x_ref = refs[0]
    o_ref = refs[-1]
    wb = refs[1:-1]

    h = x_ref[...].astype(jnp.float32)
    for i in range(n_layers):
        w = wb[2 * i][...]
        b = wb[2 * i + 1][...]
        h = jnp.dot(h, w, preferred_element_type=jnp.float32)
        h = h + b.astype(jnp.float32)  # (1, N) broadcast over rows
        if (not activate_last) and i < n_layers - 1:
            h = _apply_activation(h, activate, slope)
    o_ref[...] = h.astype(o_ref.dtype)


# ----------------------------------------------------------------------------
# Wrapper: flatten leading dims, pad, run the fused kernel, slice, restore
# ----------------------------------------------------------------------------
def mlp_forward(x, params, *, activate="leaky_relu", slope=0.01,
                activate_last=False, tm=512):
    lead_shape = x.shape[:-1]
    in_dim = x.shape[-1]
    dtype = x.dtype
    itemsize = jnp.dtype(dtype).itemsize

    h = x.reshape(-1, in_dim)
    M = h.shape[0]
    n_layers = len(params)
    out_dim = params[-1][0].shape[1]

    # ---- row tiling: pad M to a multiple of the tile (tile itself mult of 8)
    m8 = _round_up(max(M, 1), 8)
    tile_m = min(tm, m8)
    m_pad = _round_up(max(M, 1), tile_m)
    if m_pad != M:
        h = jnp.pad(h, ((0, m_pad - M), (0, 0)))

    # ---- lane-dense final output: pad last layer's out dim to a 128 multiple
    n_out_pad = _round_up(out_dim, 128)

    flat_args = [h]
    in_specs = [pl.BlockSpec((tile_m, in_dim), lambda i: (i, 0))]

    flops = 0
    transcendentals = 0
    bytes_accessed = m_pad * in_dim * itemsize

    for li, (w_t, b) in enumerate(params):
        k_i, n_i = w_t.shape
        if b is None:
            b = jnp.zeros((n_i,), dtype=w_t.dtype)
        if li == n_layers - 1 and n_i != n_out_pad:
            w_t = jnp.pad(w_t, ((0, 0), (0, n_out_pad - n_i)))
            b = jnp.pad(b, ((0, n_out_pad - n_i),))
            n_blk = n_out_pad
        else:
            n_blk = n_i
        b2 = b.reshape(1, n_blk)
        flat_args += [w_t, b2]
        in_specs += [
            pl.BlockSpec((k_i, n_blk), lambda i: (0, 0)),  # weight: resident
            pl.BlockSpec((1, n_blk), lambda i: (0, 0)),    # bias:   resident
        ]
        flops += 2 * m_pad * k_i * n_blk
        bytes_accessed += (k_i * n_blk + n_blk) * itemsize
        if (not activate_last) and li < n_layers - 1 and activate in (
                "sigmoid", "tanh", "gelu"):
            transcendentals += m_pad * n_blk
    bytes_accessed += m_pad * n_out_pad * itemsize

    # ---- VMEM budget: resident weights (x2 buffering headroom) + IO tiles +
    #      fp32 intermediates, with a fixed safety margin, capped at v7x's 64MiB.
    # TODO(synk): for hidden sizes whose weights exceed ~64 MiB, add N/K tiling
    # with a pl.when-initialized accumulator instead of resident weights.
    weight_bytes = sum(int(a.size) * a.dtype.itemsize for a in flat_args[1:])
    io_tile_bytes = 2 * tile_m * (in_dim + n_out_pad) * itemsize
    inter_bytes = tile_m * sum(w.shape[1] for w, _ in params) * 4
    vmem_needed = 2 * weight_bytes + io_tile_bytes + inter_bytes + (4 << 20)
    vmem_limit = int(min(64 << 20, max(vmem_needed, 16 << 20)))

    kernel = functools.partial(
        _fused_mlp_kernel,
        n_layers=n_layers,
        activate=activate,
        slope=slope,
        activate_last=activate_last,
    )

    out = pl.pallas_call(
        kernel,
        out_shape=jax.ShapeDtypeStruct((m_pad, n_out_pad), dtype),
        grid_spec=pltpu.PrefetchScalarGridSpec(
            num_scalar_prefetch=0,
            grid=(m_pad // tile_m,),
            in_specs=in_specs,
            out_specs=pl.BlockSpec((tile_m, n_out_pad), lambda i: (i, 0)),
        ),
        compiler_params=pltpu.CompilerParams(
            dimension_semantics=("parallel",),
            vmem_limit_bytes=vmem_limit,
        ),
        cost_estimate=pl.CostEstimate(
            flops=int(flops),
            transcendentals=int(transcendentals),
            bytes_accessed=int(bytes_accessed),
        ),
    )(*flat_args)

    out = out[:M, :out_dim]
    return out.reshape(*lead_shape, out_dim)


# ----------------------------------------------------------------------------
# Parameter init (Xavier-uniform weights, zero bias) — matches init_weights
# ----------------------------------------------------------------------------
def init_mlp_params(key, layers, bias=True, dtype=jnp.float32):
    params = []
    for i in range(len(layers) - 1):
        key, wkey = jax.random.split(key)
        fan_in, fan_out = layers[i], layers[i + 1]
        limit = (6.0 / (fan_in + fan_out)) ** 0.5
        # PyTorch Linear weight is (out, in); store transposed (in, out).
        w_t = jax.random.uniform(
            wkey, (fan_in, fan_out), dtype=dtype, minval=-limit, maxval=limit
        )
        b = jnp.zeros((fan_out,), dtype=dtype) if bias else None
        params.append((w_t, b))
    return params


# ----------------------------------------------------------------------------
# Pure-JAX reference
# ----------------------------------------------------------------------------
def mlp_forward_ref(x, params, *, activate="leaky_relu", slope=0.01,
                    activate_last=False):
    lead_shape = x.shape[:-1]
    h = x.reshape(-1, x.shape[-1]).astype(jnp.float32)
    n = len(params)
    for i, (w_t, b) in enumerate(params):
        h = h @ w_t.astype(jnp.float32)
        if b is not None:
            h = h + b.astype(jnp.float32)
        if (not activate_last) and i < n - 1:
            h = _apply_activation(h, activate, slope)
    return h.reshape(*lead_shape, -1).astype(x.dtype)


if __name__ == "__main__":
    key = jax.random.PRNGKey(0)
    kx, kp = jax.random.split(key)

    # layers = [in_dim, hidden, hidden, out_dim]
    layers = [16, 32, 32, 8]
    params = init_mlp_params(kp, layers, bias=True)

    # Arbitrary leading dims (flattened rows = 15, exercises row padding),
    # last dim = in_dim.
    x = jax.random.normal(kx, (3, 5, 16), dtype=jnp.float32)

    out = mlp_forward(x, params, activate="leaky_relu", slope=0.01,
                      activate_last=False)
    out = jax.block_until_ready(out)
    ref = mlp_forward_ref(x, params, activate="leaky_relu", slope=0.01,
                          activate_last=False)
    assert out.shape == (3, 5, 8), out.shape
    assert jnp.allclose(out, ref, atol=1e-5, rtol=1e-5), "leaky_relu mismatch"

    # Second activation flavor to exercise the EUP path.
    out_g = mlp_forward(x, params, activate="gelu", activate_last=False)
    out_g = jax.block_until_ready(out_g)
    ref_g = mlp_forward_ref(x, params, activate="gelu", activate_last=False)
    assert jnp.allclose(out_g, ref_g, atol=1e-4, rtol=1e-4), "gelu mismatch"

    print("KERNEL_OK")
</pallas_src>

<mosaic_0001>
module attributes {stable_mosaic.version = 11 : i64} {
  func.func @_fused_mlp_kernel(%arg0: i32, %arg1: memref<16x16xf32, #tpu.memory_space<vmem>>, %arg2: memref<16x32xf32, #tpu.memory_space<vmem>>, %arg3: memref<1x32xf32, #tpu.memory_space<vmem>>, %arg4: memref<32x32xf32, #tpu.memory_space<vmem>>, %arg5: memref<1x32xf32, #tpu.memory_space<vmem>>, %arg6: memref<32x128xf32, #tpu.memory_space<vmem>>, %arg7: memref<1x128xf32, #tpu.memory_space<vmem>>, %arg8: memref<16x128xf32, #tpu.memory_space<vmem>>) attributes {dimension_semantics = [#tpu.dimension_semantics<parallel>], iteration_bounds = array<i64: 1>, scalar_prefetch = 0 : i64, scratch_operands = 0 : i64, tpu.core_type = #tpu.core_type<tc>, window_params = [{transform_indices = @transform_0, window_bounds = array<i64: 16, 16>}, {pipeline_mode = #tpu.pipeline_mode<synchronous>, transform_indices = @transform_1, window_bounds = array<i64: 16, 32>}, {pipeline_mode = #tpu.pipeline_mode<synchronous>, transform_indices = @transform_2, window_bounds = array<i64: 1, 32>}, {pipeline_mode = #tpu.pipeline_mode<synchronous>, transform_indices = @transform_3, window_bounds = array<i64: 32, 32>}, {pipeline_mode = #tpu.pipeline_mode<synchronous>, transform_indices = @transform_4, window_bounds = array<i64: 1, 32>}, {pipeline_mode = #tpu.pipeline_mode<synchronous>, transform_indices = @transform_5, window_bounds = array<i64: 32, 128>}, {pipeline_mode = #tpu.pipeline_mode<synchronous>, transform_indices = @transform_6, window_bounds = array<i64: 1, 128>}, {transform_indices = @transform_7, window_bounds = array<i64: 16, 128>}]} {
    %c0 = arith.constant 0 : index
    %c0_0 = arith.constant 0 : index
    %0 = vector.load %arg1[%c0, %c0_0] : memref<16x16xf32, #tpu.memory_space<vmem>>, vector<16x16xf32>
    %c0_1 = arith.constant 0 : index
    %c0_2 = arith.constant 0 : index
    %1 = vector.load %arg2[%c0_1, %c0_2] : memref<16x32xf32, #tpu.memory_space<vmem>>, vector<16x32xf32>
    %c0_3 = arith.constant 0 : index
    %c0_4 = arith.constant 0 : index
    %2 = vector.load %arg3[%c0_3, %c0_4] : memref<1x32xf32, #tpu.memory_space<vmem>>, vector<1x32xf32>
    %cst = arith.constant dense<0.000000e+00> : vector<16x32xf32>
    %3 = tpu.matmul %0, %1, %cst {dimension_numbers = #tpu.dot_dimension_numbers<[1], [0], [0], [1], [0, 0, 1, 1], [], []>} : vector<16x16xf32>, vector<16x32xf32>, vector<16x32xf32> -> vector<16x32xf32>
    %4 = vector.broadcast %2 : vector<1x32xf32> to vector<16x32xf32>
    %5 = arith.addf %3, %4 : vector<16x32xf32>
    %cst_5 = arith.constant 0.000000e+00 : f32
    %6 = vector.broadcast %cst_5 : f32 to vector<16x32xf32>
    %7 = arith.cmpf oge, %5, %6 : vector<16x32xf32>
    %cst_6 = arith.constant 0.00999999977 : f32
    %8 = vector.broadcast %cst_6 : f32 to vector<16x32xf32>
    %9 = arith.mulf %8, %5 : vector<16x32xf32>
    %10 = arith.select %7, %5, %9 : vector<16x32xi1>, vector<16x32xf32>
    %c0_7 = arith.constant 0 : index
    %c0_8 = arith.constant 0 : index
    %11 = vector.load %arg4[%c0_7, %c0_8] : memref<32x32xf32, #tpu.memory_space<vmem>>, vector<32x32xf32>
    %c0_9 = arith.constant 0 : index
    %c0_10 = arith.constant 0 : index
    %12 = vector.load %arg5[%c0_9, %c0_10] : memref<1x32xf32, #tpu.memory_space<vmem>>, vector<1x32xf32>
    %cst_11 = arith.constant dense<0.000000e+00> : vector<16x32xf32>
    %13 = tpu.matmul %10, %11, %cst_11 {dimension_numbers = #tpu.dot_dimension_numbers<[1], [0], [0], [1], [0, 0, 1, 1], [], []>} : vector<16x32xf32>, vector<32x32xf32>, vector<16x32xf32> -> vector<16x32xf32>
    %14 = vector.broadcast %12 : vector<1x32xf32> to vector<16x32xf32>
    %15 = arith.addf %13, %14 : vector<16x32xf32>
    %cst_12 = arith.constant 0.000000e+00 : f32
    %16 = vector.broadcast %cst_12 : f32 to vector<16x32xf32>
    %17 = arith.cmpf oge, %15, %16 : vector<16x32xf32>
    %cst_13 = arith.constant 0.00999999977 : f32
    %18 = vector.broadcast %cst_13 : f32 to vector<16x32xf32>
    %19 = arith.mulf %18, %15 : vector<16x32xf32>
    %20 = arith.select %17, %15, %19 : vector<16x32xi1>, vector<16x32xf32>
    %c0_14 = arith.constant 0 : index
    %c0_15 = arith.constant 0 : index
    %21 = vector.load %arg6[%c0_14, %c0_15] : memref<32x128xf32, #tpu.memory_space<vmem>>, vector<32x128xf32>
    %c0_16 = arith.constant 0 : index
    %c0_17 = arith.constant 0 : index
    %22 = vector.load %arg7[%c0_16, %c0_17] : memref<1x128xf32, #tpu.memory_space<vmem>>, vector<1x128xf32>
    %cst_18 = arith.constant dense<0.000000e+00> : vector<16x128xf32>
    %23 = tpu.matmul %20, %21, %cst_18 {dimension_numbers = #tpu.dot_dimension_numbers<[1], [0], [0], [1], [0, 0, 1, 1], [], []>} : vector<16x32xf32>, vector<32x128xf32>, vector<16x128xf32> -> vector<16x128xf32>
    %24 = vector.broadcast %22 : vector<1x128xf32> to vector<16x128xf32>
    %25 = arith.addf %23, %24 : vector<16x128xf32>
    %c0_19 = arith.constant 0 : index
    %c0_20 = arith.constant 0 : index
    %26 = vector.load %arg8[%c0_19, %c0_20] : memref<16x128xf32, #tpu.memory_space<vmem>>, vector<16x128xf32>
    tpu.vector_store %arg8[%c0_19, %c0_20], %25 {strides = array<i32>} : memref<16x128xf32, #tpu.memory_space<vmem>>, vector<16x128xf32>,
    return
  }
  func.func @transform_0(%arg0: i32) -> (i32, i32) {
    %c0_i32 = arith.constant 0 : i32
    %c0_i32_0 = arith.constant 0 : i32
    return %arg0, %c0_i32 : i32, i32
  }
  func.func @transform_1(%arg0: i32) -> (i32, i32) {
    %c0_i32 = arith.constant 0 : i32
    %c0_i32_0 = arith.constant 0 : i32
    %c0_i32_1 = arith.constant 0 : i32
    return %c0_i32, %c0_i32_0 : i32, i32
  }
  func.func @transform_2(%arg0: i32) -> (i32, i32) {
    %c0_i32 = arith.constant 0 : i32
    %c0_i32_0 = arith.constant 0 : i32
    %c0_i32_1 = arith.constant 0 : i32
    return %c0_i32, %c0_i32_0 : i32, i32
  }
  func.func @transform_3(%arg0: i32) -> (i32, i32) {
    %c0_i32 = arith.constant 0 : i32
    %c0_i32_0 = arith.constant 0 : i32
    %c0_i32_1 = arith.constant 0 : i32
    return %c0_i32, %c0_i32_0 : i32, i32
  }
  func.func @transform_4(%arg0: i32) -> (i32, i32) {
    %c0_i32 = arith.constant 0 : i32
    %c0_i32_0 = arith.constant 0 : i32
    %c0_i32_1 = arith.constant 0 : i32
    return %c0_i32, %c0_i32_0 : i32, i32
  }
  func.func @transform_5(%arg0: i32) -> (i32, i32) {
    %c0_i32 = arith.constant 0 : i32
    %c0_i32_0 = arith.constant 0 : i32
    %c0_i32_1 = arith.constant 0 : i32
    return %c0_i32, %c0_i32_0 : i32, i32
  }
  func.func @transform_6(%arg0: i32) -> (i32, i32) {
    %c0_i32 = arith.constant 0 : i32
    %c0_i32_0 = arith.constant 0 : i32
    %c0_i32_1 = arith.constant 0 : i32
    return %c0_i32, %c0_i32_0 : i32, i32
  }
  func.func @transform_7(%arg0: i32) -> (i32, i32) {
    %c0_i32 = arith.constant 0 : i32
    %c0_i32_0 = arith.constant 0 : i32
    return %arg0, %c0_i32 : i32, i32
  }
}

</mosaic_0001>

<llo_original>
// kernel: tpu_custom_call.1
$region0: #{tpu_custom_call.1}
  #allocation0 [shape = 'u32[]', space=smem, size = 0x4, offset = 0x4, fixed_abs, tag = 'smem constant byte address 0x4 - core index']
  #allocation1 [shape = 'u32[144,128]{1,0:T(1,128)}', space=vmem, size = 0x12000, scoped, tag = 'internal scratch']
  %s0 = inlined_call_operand.hbm [shape: f32[16,16], index: 0, kind: input, shape index: {}]
  %s1 = inlined_call_operand.hbm [shape: f32[16,32], index: 1, kind: input, shape index: {}]
  %s2 = inlined_call_operand.vmem [shape: f32[1,32], index: 2, kind: input, shape index: {}]
  %s3 = inlined_call_operand.hbm [shape: f32[32,32], index: 3, kind: input, shape index: {}]
  %s4 = inlined_call_operand.vmem [shape: f32[1,32], index: 4, kind: input, shape index: {}]
  %s5 = inlined_call_operand.hbm [shape: f32[32,128], index: 5, kind: input, shape index: {}]
  %s6 = inlined_call_operand.vmem [shape: f32[1,128], index: 6, kind: input, shape index: {}]
  %s7 = inlined_call_operand.hbm [shape: f32[16,128], index: 7, kind: output, shape index: {}]
  %s8 = sld [smem:[#allocation0]]
  $region54: #{tpu_custom_call.1} parent=0
    _
  %s10 = ssub.s32 1, %s8
  %s11 = scalar_select 0, %s10, %s8
  $region1: #{tpu_custom_call.1} parent=0
    #allocation2 [shape = 'u8[8192]{0}', space=vmem, size = 0x2000, scoped, tag = 'input window, operand 0, single buffered']
    #allocation3 [shape = 's32[1]{0}', space=sflag, size = 0x4, scoped, tag = 'scoped memory for tpu_custom_call.1']
    #allocation4 [shape = 's32[1]{0}', space=sflag, size = 0x4, scoped, tag = 'scoped memory for tpu_custom_call.1']
    #allocation5 [shape = 'u8[8192]{0}', space=vmem, size = 0x2000, scoped, tag = 'input window, operand 1, single buffered']
    #allocation6 [shape = 's32[1]{0}', space=sflag, size = 0x4, scoped, tag = 'scoped memory for tpu_custom_call.1']
    #allocation7 [shape = 'u8[16384]{0}', space=vmem, size = 0x4000, scoped, tag = 'input window, operand 3, single buffered']
    #allocation8 [shape = 'u8[16384]{0}', space=vmem, size = 0x4000, scoped, tag = 'input window, operand 5, single buffered']
    #allocation9 [shape = 's32[1]{0}', space=sflag, size = 0x4, scoped, tag = 'scoped memory for tpu_custom_call.1']
    #allocation10 [shape = 'u8[8192]{0}', space=vmem, size = 0x2000, scoped, tag = 'output window, operand 0, single buffered']
    %12 = vsyncpa [#allocation3], 0
    %13 = vsyncpa [#allocation6], 0
    %14 = vsyncpa [#allocation9], 0
    %15 = vsyncpa [#allocation4], 0
    // Predicated region
    $region2: #{tpu_custom_call.1} parent=1 // pred_check
      _
    $region3: #{tpu_custom_call.1} parent=1 // pred_check_branch
      %17 = sbr.rel (0) target = $region5
    $region4: #{tpu_custom_call.1} parent=1 // pred_region
      %s19 = ssub.s32 256, 256
      %20 = vsyncadd [#allocation3], %s19
      %s21 = sshll.u32 [#allocation2], 4
      %s22 = int_to_ptr.vmem [resolvable:$true] %s21
      %27 = dma.hbm_to_vmem [thread:$0]  %s0, 256, %s22, [#allocation3], 128, 128, 8
    $region5: #{tpu_custom_call.1} parent=1 // pred_fallthru
      _
    // Predicated region
    $region6: #{tpu_custom_call.1} parent=1 // pred_check
      _
    $region7: #{tpu_custom_call.1} parent=1 // pred_check_branch
      %29 = sbr.rel (0) target = $region9
    $region8: #{tpu_custom_call.1} parent=1 // pred_region
      %s31 = ssub.s32 256, 256
      %32 = vsyncadd [#allocation6], %s31
      %s33 = sshll.u32 [#allocation5], 4
      %s34 = int_to_ptr.vmem [resolvable:$true] %s33
      %39 = dma.hbm_to_vmem [thread:$0]  %s1, 256, %s34, [#allocation6], 128, 128, 8
    $region9: #{tpu_custom_call.1} parent=1 // pred_fallthru
      _
    // Predicated region
    $region10: #{tpu_custom_call.1} parent=1 // pred_check
      _
    $region11: #{tpu_custom_call.1} parent=1 // pred_check_branch
      %41 = sbr.rel (0) target = $region13
    $region12: #{tpu_custom_call.1} parent=1 // pred_region
      _
    $region13: #{tpu_custom_call.1} parent=1 // pred_fallthru
      _
    // Predicated region
    $region14: #{tpu_custom_call.1} parent=1 // pred_check
      _
    $region15: #{tpu_custom_call.1} parent=1 // pred_check_branch
      %43 = sbr.rel (0) target = $region17
    $region16: #{tpu_custom_call.1} parent=1 // pred_region
      %s45 = ssub.s32 512, 512
      %46 = vsyncadd [#allocation6], %s45
      %s47 = sshll.u32 [#allocation7], 4
      %s48 = int_to_ptr.vmem [resolvable:$true] %s47
      %53 = dma.hbm_to_vmem [thread:$0]  %s3, 512, %s48, [#allocation6], 128, 128, 8
    $region17: #{tpu_custom_call.1} parent=1 // pred_fallthru
      _
    // Predicated region
    $region18: #{tpu_custom_call.1} parent=1 // pred_check
      _
    $region19: #{tpu_custom_call.1} parent=1 // pred_check_branch
      %55 = sbr.rel (0) target = $region21
    $region20: #{tpu_custom_call.1} parent=1 // pred_region
      _
    $region21: #{tpu_custom_call.1} parent=1 // pred_fallthru
      _
    // Predicated region
    $region22: #{tpu_custom_call.1} parent=1 // pred_check
      _
    $region23: #{tpu_custom_call.1} parent=1 // pred_check_branch
      %57 = sbr.rel (0) target = $region25
    $region24: #{tpu_custom_call.1} parent=1 // pred_region
      %s59 = ssub.s32 512, 512
      %60 = vsyncadd [#allocation9], %s59
      %s61 = sshll.u32 [#allocation8], 4
      %s62 = int_to_ptr.vmem [resolvable:$true] %s61
      %67 = dma.hbm_to_vmem [thread:$0]  %s5, 512, %s62, [#allocation9], 128, 128, 8
    $region25: #{tpu_custom_call.1} parent=1 // pred_fallthru
      _
    // Predicated region
    $region26: #{tpu_custom_call.1} parent=1 // pred_check
      _
    $region27: #{tpu_custom_call.1} parent=1 // pred_check_branch
      %69 = sbr.rel (0) target = $region29
    $region28: #{tpu_custom_call.1} parent=1 // pred_region
      _
    $region29: #{tpu_custom_call.1} parent=1 // pred_fallthru
      _
    // Predicated region
    $region30: #{tpu_custom_call.1} parent=1 // pred_check
      _
    $region31: #{tpu_custom_call.1} parent=1 // pred_check_branch
      %71 = sbr.rel (0) target = $region33
    $region32: #{tpu_custom_call.1} parent=1 // pred_region
      %72 = dma.done [#allocation3], 256
    $region33: #{tpu_custom_call.1} parent=1 // pred_fallthru
      _
    // Predicated region
    $region34: #{tpu_custom_call.1} parent=1 // pred_check
      _
    $region35: #{tpu_custom_call.1} parent=1 // pred_check_branch
      %74 = sbr.rel (0) target = $region37
    $region36: #{tpu_custom_call.1} parent=1 // pred_region
      %75 = dma.done [#allocation6], 256
    $region37: #{tpu_custom_call.1} parent=1 // pred_fallthru
      _
    // Predicated region
    $region38: #{tpu_custom_call.1} parent=1 // pred_check
      _
    $region39: #{tpu_custom_call.1} parent=1 // pred_check_branch
      %77 = sbr.rel (0) target = $region41
    $region40: #{tpu_custom_call.1} parent=1 // pred_region
      %78 = dma.done [#allocation6], 512
    $region41: #{tpu_custom_call.1} parent=1 // pred_fallthru
      _
    // Predicated region
    $region42: #{tpu_custom_call.1} parent=1 // pred_check
      _
    $region43: #{tpu_custom_call.1} parent=1 // pred_check_branch
      %80 = sbr.rel (0) target = $region45
    $region44: #{tpu_custom_call.1} parent=1 // pred_region
      %81 = dma.done [#allocation9], 512
    $region45: #{tpu_custom_call.1} parent=1 // pred_fallthru
      _
    %v82 = vld [vmem:[#allocation2] sm:$0xff]
    %v83 = vld [vmem:[#allocation2 + $0x8] sm:$0xff]
    %v84 = vld [vmem:[#allocation5] sm:$0xff]
    %v85 = vld [vmem:[#allocation5 + $0x8] sm:$0xff]
    %v86 = vld [vmem:[%s2] sm:$0x1]
    %v88 = vlaneseq
    %v89 = vshrl.u32 %v88, 7
    %v90 = vsub.s32 0, %v89
    %v91 = vrot.slane %v86, %v90
    %vm93 = vcmask 130048
    %v95 = vsel %vm93, %v82, 0
    %v98 = vsel %vm93, %v83, 0
    %100 = vmatprep.subr.mxu0 0.0
    %101 = vmatpush1.msra.mxu0 0.0
    %102 = vmatprep.subr.mxu0 0.0
    %103 = vmatpush1.msra.mxu0 0.0
    %104 = vmatprep.subr.mxu0 0.0
    %105 = vmatpush1.msra.mxu0 0.0
    %106 = vmatprep.subr.mxu0 0.0
    %107 = vmatpush1.msra.mxu0 0.0
    %108 = vmatprep.subr.mxu0 0.0
    %109 = vmatpush1.msra.mxu0 0.0
    %110 = vmatprep.subr.mxu0 0.0
    %111 = vmatpush1.msra.mxu0 0.0
    %112 = vmatprep.subr.mxu0 0.0
    %113 = vmatpush1.msra.mxu0 0.0
    %114 = vmatprep.subr.mxu0 0.0
    %115 = vmatpush1.msra.mxu0 0.0
    %116 = vmatprep.subr.mxu0 0.0
    %117 = vmatpush1.msra.mxu0 0.0
    %118 = vmatprep.subr.mxu0 0.0
    %119 = vmatpush1.msra.mxu0 0.0
    %120 = vmatprep.subr.mxu0 0.0
    %121 = vmatpush1.msra.mxu0 0.0
    %122 = vmatprep.subr.mxu0 0.0
    %123 = vmatpush1.msra.mxu0 0.0
    %124 = vmatprep.subr.mxu0 0.0
    %125 = vmatpush1.msra.mxu0 0.0
    %126 = vmatprep.subr.mxu0 0.0
    %127 = vmatpush1.msra.mxu0 0.0
    %128 = vmatprep.subr.mxu0 0.0
    %129 = vmatpush1.msra.mxu0 %v85
    %130 = vmatprep.subr.mxu0 0.0
    %131 = vmatpush1.msra.mxu0 %v84
    %132 = vmatprep.subr.mxu0 0.0
    %133 = vmatpush2.msra.mxu0 0.0
    %134 = vmatprep.subr.mxu0 0.0
    %135 = vmatpush2.msra.mxu0 0.0
    %136 = vmatprep.subr.mxu0 0.0
    %137 = vmatpush2.msra.mxu0 0.0
    %138 = vmatprep.subr.mxu0 0.0
    %139 = vmatpush2.msra.mxu0 0.0
    %140 = vmatprep.subr.mxu0 0.0
    %141 = vmatpush2.msra.mxu0 0.0
    %142 = vmatprep.subr.mxu0 0.0
    %143 = vmatpush2.msra.mxu0 0.0
    %144 = vmatprep.subr.mxu0 0.0
    %145 = vmatpush2.msra.mxu0 0.0
    %146 = vmatprep.subr.mxu0 0.0
    %147 = vmatpush2.msra.mxu0 0.0
    %148 = vmatprep.subr.mxu0 0.0
    %149 = vmatpush2.msra.mxu0 0.0
    %150 = vmatprep.subr.mxu0 0.0
    %151 = vmatpush2.msra.mxu0 0.0
    %152 = vmatprep.subr.mxu0 0.0
    %153 = vmatpush2.msra.mxu0 0.0
    %154 = vmatprep.subr.mxu0 0.0
    %155 = vmatpush2.msra.mxu0 0.0
    %156 = vmatprep.subr.mxu0 0.0
    %157 = vmatpush2.msra.mxu0 0.0
    %158 = vmatprep.subr.mxu0 0.0
    %159 = vmatpush2.msra.mxu0 0.0
    %160 = vmatprep.subr.mxu0 0.0
    %161 = vmatpush2.msra.mxu0 0.0
    %162 = vmatprep.subr.mxu0 0.0
    %163 = vmatpush2.msra.mxu0 0.0
    %164 = vmatprep.mubr.f32.mxu0 0.0
    %165 = vmatmul.mubr.f32.gmra.mxu0 %v95
    %v166 = vpop.f32.mrf.mxu0
    %v167 = vadd.f32 %v91, %v166
    %v168 = vpop.f32.mrf.mxu0
    %169 = vmatprep.mubr.f32.mxu0 0.0
    %170 = vmatmul.mubr.f32.gmra.mxu0 %v98
    %v171 = vpop.f32.mrf.mxu0
    %v172 = vadd.f32 %v91, %v171
    %v173 = vpop.f32.mrf.mxu0
    %174 = vdwg.mxu0
    %vm175 = vcmp.ge.f32.partialorder %v167, 0.0
    %vm176 = vcmp.ge.f32.partialorder %v172, 0.0
    %v177 = vmul.f32 %v167, 0.01
    %v178 = vmul.f32 %v172, 0.01
    %v179 = vsel %vm175, %v167, %v177
    %v180 = vsel %vm176, %v172, %v178
    %v181 = vld [vmem:[#allocation7] sm:$0xff]
    %v182 = vld [vmem:[#allocation7 + $0x8] sm:$0xff]
    %v183 = vld [vmem:[#allocation7 + $0x10] sm:$0xff]
    %v184 = vld [vmem:[#allocation7 + $0x18] sm:$0xff]
    %v185 = vld [vmem:[%s4] sm:$0x1]
    %v187 = vlaneseq
    %v188 = vshrl.u32 %v187, 7
    %v189 = vsub.s32 0, %v188
    %v190 = vrot.slane %v185, %v189
    %vm192 = vcmask 261120
    %v194 = vsel %vm192, %v179, 0
    %v197 = vsel %vm192, %v180, 0
    %199 = vmatprep.subr.mxu0 0.0
    %200 = vmatpush1.msra.mxu0 0.0
    %201 = vmatprep.subr.mxu0 0.0
    %202 = vmatpush1.msra.mxu0 0.0
    %203 = vmatprep.subr.mxu0 0.0
    %204 = vmatpush1.msra.mxu0 0.0
    %205 = vmatprep.subr.mxu0 0.0
    %206 = vmatpush1.msra.mxu0 0.0
    %207 = vmatprep.subr.mxu0 0.0
    %208 = vmatpush1.msra.mxu0 0.0
    %209 = vmatprep.subr.mxu0 0.0
    %210 = vmatpush1.msra.mxu0 0.0
    %211 = vmatprep.subr.mxu0 0.0
    %212 = vmatpush1.msra.mxu0 0.0
    %213 = vmatprep.subr.mxu0 0.0
    %214 = vmatpush1.msra.mxu0 0.0
    %215 = vmatprep.subr.mxu0 0.0
    %216 = vmatpush1.msra.mxu0 0.0
    %217 = vmatprep.subr.mxu0 0.0
    %218 = vmatpush1.msra.mxu0 0.0
    %219 = vmatprep.subr.mxu0 0.0
    %220 = vmatpush1.msra.mxu0 0.0
    %221 = vmatprep.subr.mxu0 0.0
    %222 = vmatpush1.msra.mxu0 0.0
    %223 = vmatprep.subr.mxu0 0.0
    %224 = vmatpush1.msra.mxu0 %v184
    %225 = vmatprep.subr.mxu0 0.0
    %226 = vmatpush1.msra.mxu0 %v183
    %227 = vmatprep.subr.mxu0 0.0
    %228 = vmatpush1.msra.mxu0 %v182
    %229 = vmatprep.subr.mxu0 0.0
    %230 = vmatpush1.msra.mxu0 %v181
    %231 = vmatprep.subr.mxu0 0.0
    %232 = vmatpush2.msra.mxu0 0.0
    %233 = vmatprep.subr.mxu0 0.0
    %234 = vmatpush2.msra.mxu0 0.0
    %235 = vmatprep.subr.mxu0 0.0
    %236 = vmatpush2.msra.mxu0 0.0
    %237 = vmatprep.subr.mxu0 0.0
    %238 = vmatpush2.msra.mxu0 0.0
    %239 = vmatprep.subr.mxu0 0.0
    %240 = vmatpush2.msra.mxu0 0.0
    %241 = vmatprep.subr.mxu0 0.0
    %242 = vmatpush2.msra.mxu0 0.0
    %243 = vmatprep.subr.mxu0 0.0
    %244 = vmatpush2.msra.mxu0 0.0
    %245 = vmatprep.subr.mxu0 0.0
    %246 = vmatpush2.msra.mxu0 0.0
    %247 = vmatprep.subr.mxu0 0.0
    %248 = vmatpush2.msra.mxu0 0.0
    %249 = vmatprep.subr.mxu0 0.0
    %250 = vmatpush2.msra.mxu0 0.0
    %251 = vmatprep.subr.mxu0 0.0
    %252 = vmatpush2.msra.mxu0 0.0
    %253 = vmatprep.subr.mxu0 0.0
    %254 = vmatpush2.msra.mxu0 0.0
    %255 = vmatprep.subr.mxu0 0.0
    %256 = vmatpush2.msra.mxu0 0.0
    %257 = vmatprep.subr.mxu0 0.0
    %258 = vmatpush2.msra.mxu0 0.0
    %259 = vmatprep.subr.mxu0 0.0
    %260 = vmatpush2.msra.mxu0 0.0
    %261 = vmatprep.subr.mxu0 0.0
    %262 = vmatpush2.msra.mxu0 0.0
    %263 = vmatprep.mubr.f32.mxu0 0.0
    %264 = vmatmul.mubr.f32.gmra.mxu0 %v194
    %v265 = vpop.f32.mrf.mxu0
    %v266 = vadd.f32 %v190, %v265
    %v267 = vpop.f32.mrf.mxu0
    %268 = vmatprep.mubr.f32.mxu0 0.0
    %269 = vmatmul.mubr.f32.gmra.mxu0 %v197
    %v270 = vpop.f32.mrf.mxu0
    %v271 = vadd.f32 %v190, %v270
    %v272 = vpop.f32.mrf.mxu0
    %273 = vdwg.mxu0
    %vm274 = vcmp.ge.f32.partialorder %v266, 0.0
    %vm275 = vcmp.ge.f32.partialorder %v271, 0.0
    %v276 = vmul.f32 %v266, 0.01
    %v277 = vmul.f32 %v271, 0.01
    %v278 = vsel %vm274, %v266, %v276
    %v279 = vsel %vm275, %v271, %v277
    %v280 = vld [vmem:[#allocation8] sm:$0xff]
    %v281 = vld [vmem:[#allocation8 + $0x8] sm:$0xff]
    %v282 = vld [vmem:[#allocation8 + $0x10] sm:$0xff]
    %v283 = vld [vmem:[#allocation8 + $0x18] sm:$0xff]
    %v284 = vld [vmem:[%s6] sm:$0x1]
    %v286 = vlaneseq
    %v287 = vshrl.u32 %v286, 7
    %v288 = vsub.s32 0, %v287
    %v289 = vrot.slane %v284, %v288
    %v292 = vsel %vm192, %v278, 0
    %v295 = vsel %vm192, %v279, 0
    %297 = vmatprep.subr.mxu0 0.0
    %298 = vmatpush1.msra.mxu0 0.0
    %299 = vmatprep.subr.mxu0 0.0
    %300 = vmatpush1.msra.mxu0 0.0
    %301 = vmatprep.subr.mxu0 0.0
    %302 = vmatpush1.msra.mxu0 0.0
    %303 = vmatprep.subr.mxu0 0.0
    %304 = vmatpush1.msra.mxu0 0.0
    %305 = vmatprep.subr.mxu0 0.0
    %306 = vmatpush1.msra.mxu0 0.0
    %307 = vmatprep.subr.mxu0 0.0
    %308 = vmatpush1.msra.mxu0 0.0
    %309 = vmatprep.subr.mxu0 0.0
    %310 = vmatpush1.msra.mxu0 0.0
    %311 = vmatprep.subr.mxu0 0.0
    %312 = vmatpush1.msra.mxu0 0.0
    %313 = vmatprep.subr.mxu0 0.0
    %314 = vmatpush1.msra.mxu0 0.0
    %315 = vmatprep.subr.mxu0 0.0
    %316 = vmatpush1.msra.mxu0 0.0
    %317 = vmatprep.subr.mxu0 0.0
    %318 = vmatpush1.msra.mxu0 0.0
    %319 = vmatprep.subr.mxu0 0.0
    %320 = vmatpush1.msra.mxu0 0.0
    %321 = vmatprep.subr.mxu0 0.0
    %322 = vmatpush1.msra.mxu0 %v283
    %323 = vmatprep.subr.mxu0 0.0
    %324 = vmatpush1.msra.mxu0 %v282
    %325 = vmatprep.subr.mxu0 0.0
    %326 = vmatpush1.msra.mxu0 %v281
    %327 = vmatprep.subr.mxu0 0.0
    %328 = vmatpush1.msra.mxu0 %v280
    %329 = vmatprep.subr.mxu0 0.0
    %330 = vmatpush2.msra.mxu0 0.0
    %331 = vmatprep.subr.mxu0 0.0
    %332 = vmatpush2.msra.mxu0 0.0
    %333 = vmatprep.subr.mxu0 0.0
    %334 = vmatpush2.msra.mxu0 0.0
    %335 = vmatprep.subr.mxu0 0.0
    %336 = vmatpush2.msra.mxu0 0.0
    %337 = vmatprep.subr.mxu0 0.0
    %338 = vmatpush2.msra.mxu0 0.0
    %339 = vmatprep.subr.mxu0 0.0
    %340 = vmatpush2.msra.mxu0 0.0
    %341 = vmatprep.subr.mxu0 0.0
    %342 = vmatpush2.msra.mxu0 0.0
    %343 = vmatprep.subr.mxu0 0.0
    %344 = vmatpush2.msra.mxu0 0.0
    %345 = vmatprep.subr.mxu0 0.0
    %346 = vmatpush2.msra.mxu0 0.0
    %347 = vmatprep.subr.mxu0 0.0
    %348 = vmatpush2.msra.mxu0 0.0
    %349 = vmatprep.subr.mxu0 0.0
    %350 = vmatpush2.msra.mxu0 0.0
    %351 = vmatprep.subr.mxu0 0.0
    %352 = vmatpush2.msra.mxu0 0.0
    %353 = vmatprep.subr.mxu0 0.0
    %354 = vmatpush2.msra.mxu0 0.0
    %355 = vmatprep.subr.mxu0 0.0
    %356 = vmatpush2.msra.mxu0 0.0
    %357 = vmatprep.subr.mxu0 0.0
    %358 = vmatpush2.msra.mxu0 0.0
    %359 = vmatprep.subr.mxu0 0.0
    %360 = vmatpush2.msra.mxu0 0.0
    %361 = vmatprep.mubr.f32.mxu0 0.0
    %362 = vmatmul.mubr.f32.gmra.mxu0 %v292
    %v363 = vpop.f32.mrf.mxu0
    %v364 = vadd.f32 %v289, %v363
    %v365 = vpop.f32.mrf.mxu0
    %366 = vmatprep.mubr.f32.mxu0 0.0
    %367 = vmatmul.mubr.f32.gmra.mxu0 %v295
    %v368 = vpop.f32.mrf.mxu0
    %v369 = vadd.f32 %v289, %v368
    %v370 = vpop.f32.mrf.mxu0
    %371 = vdwg.mxu0
    %372 = vst [vmem:[#allocation10] sm:$0xff] %v364
    %373 = vst [vmem:[#allocation10 + $0x8] sm:$0xff] %v369
    // Predicated region
    $region46: #{tpu_custom_call.1} parent=1 // pred_check
      _
    $region47: #{tpu_custom_call.1} parent=1 // pred_check_branch
      %375 = sbr.rel (0) target = $region49
    $region48: #{tpu_custom_call.1} parent=1 // pred_region
      %s377 = ssub.s32 256, 256
      %378 = vsyncadd [#allocation4], %s377
      %s379 = sshll.u32 [#allocation10], 4
      %s380 = int_to_ptr.vmem [resolvable:$true] %s379
      %385 = dma.vmem_to_hbm [thread:$0]  %s380, 256, %s7, [#allocation4], 128, 128, 8
    $region49: #{tpu_custom_call.1} parent=1 // pred_fallthru
      _
    // Predicated region
    $region50: #{tpu_custom_call.1} parent=1 // pred_check
      _
    $region51: #{tpu_custom_call.1} parent=1 // pred_check_branch
      %387 = sbr.rel (0) target = $region53
    $region52: #{tpu_custom_call.1} parent=1 // pred_region
      %388 = dma.done [#allocation4], 256
    $region53: #{tpu_custom_call.1} parent=1 // pred_fallthru
      _
    %389 = vsyncpa [#allocation3], 1
    %390 = vsyncpa [#allocation6], 1
    %391 = vsyncpa [#allocation9], 1
    %392 = vsyncpa [#allocation4], 1

</llo_original>
